<compile_context>
chip_gen: v5e
topology: v5e:2x2
jax: 0.10.0
libtpu: 0.0.40
codegen_flags: <defaults>
</compile_context>

<pallas_src>
from typing import NamedTuple

import jax
import jax.numpy as jnp
from jax.experimental import pallas as pl
from jax.experimental.pallas import tpu as pltpu

LANE = 128          # lane width
ROW_PAD = 16        # batch-tile granularity (covers bf16's (16,128) tile too)
NEG_BIG = -1e30     # baked action mask value (exp() underflows to exactly 0)


class PaddedParams(NamedTuple):
    w1: jax.Array       # (in_pad, 128) param dtype (bf16 by default)
    b1: jax.Array       # (1, 128)      f32
    w2: jax.Array       # (128, 128)    param dtype
    b2: jax.Array       # (1, 128)      f32, NEG_BIG in padded action lanes
    in_size: int
    in_pad: int
    hidden: int
    n_actions: int


def _round_up(x, m):
    return (x + m - 1) // m * m


def pad_params(w1, b1, w2, b2, *, param_dtype=jnp.bfloat16):
    """Pad/cast actor parameters ONCE (per param update), not per env step."""
    in_size, hidden = w1.shape
    n_actions = w2.shape[1]
    assert hidden <= LANE and n_actions <= LANE
    in_pad = max(_round_up(in_size, 8), 8)

    w1_p = (jnp.zeros((in_pad, LANE), param_dtype)
            .at[:in_size, :hidden].set(w1.astype(param_dtype)))
    b1_p = (jnp.zeros((1, LANE), jnp.float32)
            .at[0, :hidden].set(b1.astype(jnp.float32)))
    w2_p = (jnp.zeros((LANE, LANE), param_dtype)
            .at[:hidden, :n_actions].set(w2.astype(param_dtype)))
    # Bake the action-column mask into b2: padded W2 columns are zero, so the
    # padded logits become exactly NEG_BIG and never win argmax / sampling.
    b2_p = (jnp.full((1, LANE), NEG_BIG, jnp.float32)
            .at[0, :n_actions].set(b2.astype(jnp.float32)))
    return PaddedParams(w1_p, b1_p, w2_p, b2_p,
                        in_size, in_pad, hidden, n_actions)


def _pg_logits_kernel(x_ref, w1_ref, b1_ref, w2_ref, b2_ref, logits_ref):
    # x arrives f32 (tm, in_pad); cast to bf16 only for the MXU (negligible
    # traffic at width in_pad, and keeps sublane tiling simple at small B).
    x = x_ref[...].astype(w1_ref.dtype)
    # hidden = tanh(x @ W1 + b1): bf16 MXU inputs, f32 accumulate; tanh in f32.
    h = jnp.tanh(
        jnp.dot(x, w1_ref[...], preferred_element_type=jnp.float32)
        + b1_ref[...]
    )
    # logits = h @ W2 + b2  (padded action lanes already carry NEG_BIG via b2).
    # Single f32 output; probs are recomputed exactly on the tiny slice outside.
    logits_ref[...] = (
        jnp.dot(h.astype(w2_ref.dtype), w2_ref[...],
                preferred_element_type=jnp.float32)
        + b2_ref[...]
    )


def policy_gradient_logits(states, pparams: PaddedParams, *, block_m=512):
    """Masked actor logits for a batch of states via one Pallas kernel.

    states: (B, inSize) or (inSize,) f32
    returns logits (B, n_actions) f32
    """
    states = jnp.atleast_2d(jnp.asarray(states, jnp.float32))
    b, in_size = states.shape
    assert in_size == pparams.in_size
    in_pad = pparams.in_pad

    # Adaptive tile: big enough to amortize per-step overhead, without
    # over-rounding b_pad by up to block_m-1 rows.
    n_tiles = pl.cdiv(b, block_m)
    tm = _round_up(pl.cdiv(b, n_tiles), ROW_PAD)
    b_pad = _round_up(b, tm)

    # Only the (cheap, ever-changing) state rows are padded per call — to
    # in_pad (=8 for CartPole) columns, NOT 128 — weights come in ready-made.
    x_p = (jnp.zeros((b_pad, in_pad), jnp.float32)
           .at[:b, :in_size].set(states))

    grid = (b_pad // tm,)
    x_spec = pl.BlockSpec((tm, in_pad), lambda i: (i, 0))
    w1_spec = pl.BlockSpec((in_pad, LANE), lambda i: (0, 0))   # resident weights
    w2_spec = pl.BlockSpec((LANE, LANE), lambda i: (0, 0))
    bias_spec = pl.BlockSpec((1, LANE), lambda i: (0, 0))
    out_spec = pl.BlockSpec((tm, LANE), lambda i: (i, 0))

    logits_p = pl.pallas_call(
        _pg_logits_kernel,
        out_shape=jax.ShapeDtypeStruct((b_pad, LANE), jnp.float32),
        grid=grid,
        in_specs=[x_spec, w1_spec, bias_spec, w2_spec, bias_spec],
        out_specs=out_spec,
        compiler_params=pltpu.CompilerParams(
            dimension_semantics=("parallel",)),
    )(x_p, pparams.w1, pparams.b1, pparams.w2, pparams.b2)

    return logits_p[:b, :pparams.n_actions]


def policy_gradient_probs(states, pparams: PaddedParams, *, block_m=512):
    """softmax(actor(states)) — exact softmax on the tiny sliced logits."""
    logits = policy_gradient_logits(states, pparams, block_m=block_m)
    return jax.nn.softmax(logits, axis=-1), logits


def policy_gradient_forward(features, pparams: PaddedParams, *, train=True,
                            key=None):
    """Matches the torch module: returns (action, proba[action]) for one state."""
    probs, logits = policy_gradient_probs(features, pparams)
    proba = probs[0]
    if train:
        # torch uses host-side np.random.choice(p=proba); sampling from the
        # logits is the same distribution without an exp->log round trip.
        action = jax.random.categorical(key, logits[0])
    else:
        action = jnp.argmax(proba)
    return action, proba[action]


def reference_probs(states, w1, b1, w2, b2):
    """Plain-JAX reference mirroring the kernel's bf16-input / f32-acc path."""
    f = lambda a: a.astype(jnp.bfloat16).astype(jnp.float32)
    x = jnp.atleast_2d(jnp.asarray(states, jnp.float32))
    h = jnp.tanh(f(x) @ f(w1) + b1)
    logits = f(h) @ f(w2) + b2
    return jax.nn.softmax(logits, axis=-1), logits


def init_params(key, in_size, hidden, n_actions):
    k1, k2, k3, k4 = jax.random.split(key, 4)
    # PyTorch Linear default init: U(-1/sqrt(fan_in), 1/sqrt(fan_in)).
    lim1 = 1.0 / jnp.sqrt(jnp.float32(in_size))
    lim2 = 1.0 / jnp.sqrt(jnp.float32(hidden))
    w1 = jax.random.uniform(k1, (in_size, hidden), jnp.float32, -lim1, lim1)
    b1 = jax.random.uniform(k2, (hidden,), jnp.float32, -lim1, lim1)
    w2 = jax.random.uniform(k3, (hidden, n_actions), jnp.float32, -lim2, lim2)
    b2 = jax.random.uniform(k4, (n_actions,), jnp.float32, -lim2, lim2)
    return w1, b1, w2, b2


if __name__ == "__main__":
    # CartPole-like sizes: state dim 4, hidden layers [128], 2 actions.
    # TODO(synk): featExtractor / gym env glue is outside the kernel's scope.
    IN_SIZE, HIDDEN, N_ACTIONS = 4, 128, 2
    BATCH = 32   # batched hot path: fills sublanes instead of 1 row per call

    root = jax.random.PRNGKey(0)
    k_feat, k_params, k_sample, k_batch = jax.random.split(root, 4)

    params = init_params(k_params, IN_SIZE, HIDDEN, N_ACTIONS)
    pparams = pad_params(*params)            # pad/cast ONCE, outside the loop

    # Batched kernel call + correctness check against a plain-JAX reference.
    states = jax.random.normal(k_batch, (BATCH, IN_SIZE), jnp.float32)
    probs, logits = policy_gradient_probs(states, pparams)
    jax.block_until_ready((probs, logits))

    ref_probs, ref_logits = reference_probs(states, *params)
    assert probs.shape == (BATCH, N_ACTIONS) and logits.shape == (BATCH, N_ACTIONS)
    assert jnp.allclose(logits, ref_logits, atol=2e-2), (logits, ref_logits)
    assert jnp.allclose(probs, ref_probs, atol=2e-3), (probs, ref_probs)
    assert jnp.allclose(jnp.sum(probs, axis=-1), 1.0, atol=1e-5)

    # Single-state forward matching the torch module (train=True samples).
    features = jax.random.normal(k_feat, (IN_SIZE,), jnp.float32)
    action, p_action = policy_gradient_forward(
        features, pparams, train=True, key=k_sample)
    jax.block_until_ready((action, p_action))
    assert 0 <= int(action) < N_ACTIONS
    assert 0.0 <= float(p_action) <= 1.0

    # Eval path (argmax), i.e. the torch module's train=False branch.
    action_eval, p_eval = policy_gradient_forward(features, pparams, train=False)
    jax.block_until_ready((action_eval, p_eval))
    assert 0 <= int(action_eval) < N_ACTIONS

    print("KERNEL_OK")
</pallas_src>

<mosaic_0001>
module attributes {stable_mosaic.version = 11 : i64} {
  func.func @_pg_logits_kernel(%arg0: i32, %arg1: memref<32x8xf32, #tpu.memory_space<vmem>>, %arg2: memref<8x128xbf16, #tpu.memory_space<vmem>>, %arg3: memref<1x128xf32, #tpu.memory_space<vmem>>, %arg4: memref<128x128xbf16, #tpu.memory_space<vmem>>, %arg5: memref<1x128xf32, #tpu.memory_space<vmem>>, %arg6: memref<32x128xf32, #tpu.memory_space<vmem>>) attributes {dimension_semantics = [#tpu.dimension_semantics<parallel>], iteration_bounds = array<i64: 1>, scalar_prefetch = 0 : i64, scratch_operands = 0 : i64, tpu.core_type = #tpu.core_type<tc>, window_params = [{transform_indices = @transform_0, window_bounds = array<i64: 32, 8>}, {pipeline_mode = #tpu.pipeline_mode<synchronous>, transform_indices = @transform_1, window_bounds = array<i64: 8, 128>}, {pipeline_mode = #tpu.pipeline_mode<synchronous>, transform_indices = @transform_2, window_bounds = array<i64: 1, 128>}, {pipeline_mode = #tpu.pipeline_mode<synchronous>, transform_indices = @transform_3, window_bounds = array<i64: 128, 128>}, {pipeline_mode = #tpu.pipeline_mode<synchronous>, transform_indices = @transform_4, window_bounds = array<i64: 1, 128>}, {transform_indices = @transform_5, window_bounds = array<i64: 32, 128>}]} {
    %c0 = arith.constant 0 : index
    %c0_0 = arith.constant 0 : index
    %0 = vector.load %arg1[%c0, %c0_0] : memref<32x8xf32, #tpu.memory_space<vmem>>, vector<32x8xf32>
    %1 = arith.truncf %0 : vector<32x8xf32> to vector<32x8xbf16>
    %c0_1 = arith.constant 0 : index
    %c0_2 = arith.constant 0 : index
    %2 = vector.load %arg2[%c0_1, %c0_2] : memref<8x128xbf16, #tpu.memory_space<vmem>>, vector<8x128xbf16>
    %cst = arith.constant dense<0.000000e+00> : vector<32x128xf32>
    %3 = tpu.matmul %1, %2, %cst {dimension_numbers = #tpu.dot_dimension_numbers<[1], [0], [0], [1], [0, 0, 1, 1], [], []>} : vector<32x8xbf16>, vector<8x128xbf16>, vector<32x128xf32> -> vector<32x128xf32>
    %c0_3 = arith.constant 0 : index
    %c0_4 = arith.constant 0 : index
    %4 = vector.load %arg3[%c0_3, %c0_4] : memref<1x128xf32, #tpu.memory_space<vmem>>, vector<1x128xf32>
    %5 = vector.broadcast %4 : vector<1x128xf32> to vector<32x128xf32>
    %6 = arith.addf %3, %5 : vector<32x128xf32>
    %7 = math.tanh %6 : vector<32x128xf32>
    %8 = arith.truncf %7 : vector<32x128xf32> to vector<32x128xbf16>
    %c0_5 = arith.constant 0 : index
    %c0_6 = arith.constant 0 : index
    %9 = vector.load %arg4[%c0_5, %c0_6] : memref<128x128xbf16, #tpu.memory_space<vmem>>, vector<128x128xbf16>
    %cst_7 = arith.constant dense<0.000000e+00> : vector<32x128xf32>
    %10 = tpu.matmul %8, %9, %cst_7 {dimension_numbers = #tpu.dot_dimension_numbers<[1], [0], [0], [1], [0, 0, 1, 1], [], []>} : vector<32x128xbf16>, vector<128x128xbf16>, vector<32x128xf32> -> vector<32x128xf32>
    %c0_8 = arith.constant 0 : index
    %c0_9 = arith.constant 0 : index
    %11 = vector.load %arg5[%c0_8, %c0_9] : memref<1x128xf32, #tpu.memory_space<vmem>>, vector<1x128xf32>
    %12 = vector.broadcast %11 : vector<1x128xf32> to vector<32x128xf32>
    %13 = arith.addf %10, %12 : vector<32x128xf32>
    %c0_10 = arith.constant 0 : index
    %c0_11 = arith.constant 0 : index
    %14 = vector.load %arg6[%c0_10, %c0_11] : memref<32x128xf32, #tpu.memory_space<vmem>>, vector<32x128xf32>
    tpu.vector_store %arg6[%c0_10, %c0_11], %13 {strides = array<i32>} : memref<32x128xf32, #tpu.memory_space<vmem>>, vector<32x128xf32>,
    return
  }
  func.func @transform_0(%arg0: i32) -> (i32, i32) {
    %c0_i32 = arith.constant 0 : i32
    %c0_i32_0 = arith.constant 0 : i32
    return %arg0, %c0_i32 : i32, i32
  }
  func.func @transform_1(%arg0: i32) -> (i32, i32) {
    %c0_i32 = arith.constant 0 : i32
    %c0_i32_0 = arith.constant 0 : i32
    %c0_i32_1 = arith.constant 0 : i32
    return %c0_i32, %c0_i32_0 : i32, i32
  }
  func.func @transform_2(%arg0: i32) -> (i32, i32) {
    %c0_i32 = arith.constant 0 : i32
    %c0_i32_0 = arith.constant 0 : i32
    %c0_i32_1 = arith.constant 0 : i32
    return %c0_i32, %c0_i32_0 : i32, i32
  }
  func.func @transform_3(%arg0: i32) -> (i32, i32) {
    %c0_i32 = arith.constant 0 : i32
    %c0_i32_0 = arith.constant 0 : i32
    %c0_i32_1 = arith.constant 0 : i32
    return %c0_i32, %c0_i32_0 : i32, i32
  }
  func.func @transform_4(%arg0: i32) -> (i32, i32) {
    %c0_i32 = arith.constant 0 : i32
    %c0_i32_0 = arith.constant 0 : i32
    %c0_i32_1 = arith.constant 0 : i32
    return %c0_i32, %c0_i32_0 : i32, i32
  }
  func.func @transform_5(%arg0: i32) -> (i32, i32) {
    %c0_i32 = arith.constant 0 : i32
    %c0_i32_0 = arith.constant 0 : i32
    return %arg0, %c0_i32 : i32, i32
  }
}

</mosaic_0001>

<llo_original>
// kernel: tpu_custom_call.1
$region0: #{tpu_custom_call.1}
  #allocation0 [shape = 'u32[]', space=smem, size = 0x4, offset = 0x4, fixed_abs, tag = 'smem constant byte address 0x4 - core index']
  #allocation1 [shape = 'u32[72,128]{1,0:T(1,128)}', space=vmem, size = 0x9000, scoped, tag = 'internal scratch']
  %s0 = inlined_call_operand.vmem [shape: f32[32,8], index: 0, kind: input, shape index: {}]
  %s1 = inlined_call_operand.vmem [shape: bf16[8,128], index: 1, kind: input, shape index: {}]
  %s2 = inlined_call_operand.vmem [shape: f32[1,128], index: 2, kind: input, shape index: {}]
  %s3 = inlined_call_operand.hbm [shape: bf16[128,128], index: 3, kind: input, shape index: {}]
  %s4 = inlined_call_operand.vmem [shape: f32[1,128], index: 4, kind: input, shape index: {}]
  %s5 = inlined_call_operand.hbm [shape: f32[32,128], index: 5, kind: output, shape index: {}]
  %s6 = sld [smem:[#allocation0]]
  $region34: #{tpu_custom_call.1} parent=0
    _
  %s8 = ssub.s32 1, %s6
  %s9 = scalar_select 0, %s8, %s6
  $region1: #{tpu_custom_call.1} parent=0
    #allocation2 [shape = 'u8[32768]{0}', space=vmem, size = 0x8000, scoped, tag = 'input window, operand 3, single buffered']
    #allocation3 [shape = 's32[1]{0}', space=sflag, size = 0x4, scoped, tag = 'scoped memory for tpu_custom_call.1']
    #allocation4 [shape = 's32[1]{0}', space=sflag, size = 0x4, scoped, tag = 'scoped memory for tpu_custom_call.1']
    #allocation5 [shape = 'u8[16384]{0}', space=vmem, size = 0x4000, scoped, tag = 'output window, operand 0, single buffered']
    %10 = vsyncpa [#allocation3], 0
    %11 = vsyncpa [#allocation4], 0
    // Predicated region
    $region2: #{tpu_custom_call.1} parent=1 // pred_check
      _
    $region3: #{tpu_custom_call.1} parent=1 // pred_check_branch
      %13 = sbr.rel (0) target = $region5
    $region4: #{tpu_custom_call.1} parent=1 // pred_region
      _
    $region5: #{tpu_custom_call.1} parent=1 // pred_fallthru
      _
    // Predicated region
    $region6: #{tpu_custom_call.1} parent=1 // pred_check
      _
    $region7: #{tpu_custom_call.1} parent=1 // pred_check_branch
      %15 = sbr.rel (0) target = $region9
    $region8: #{tpu_custom_call.1} parent=1 // pred_region
      _
    $region9: #{tpu_custom_call.1} parent=1 // pred_fallthru
      _
    // Predicated region
    $region10: #{tpu_custom_call.1} parent=1 // pred_check
      _
    $region11: #{tpu_custom_call.1} parent=1 // pred_check_branch
      %17 = sbr.rel (0) target = $region13
    $region12: #{tpu_custom_call.1} parent=1 // pred_region
      _
    $region13: #{tpu_custom_call.1} parent=1 // pred_fallthru
      _
    // Predicated region
    $region14: #{tpu_custom_call.1} parent=1 // pred_check
      _
    $region15: #{tpu_custom_call.1} parent=1 // pred_check_branch
      %19 = sbr.rel (0) target = $region17
    $region16: #{tpu_custom_call.1} parent=1 // pred_region
      %21 = vsyncadd [#allocation3], 0
      %s22 = sshll.u32 %s3, 4
      %s23 = int_to_ptr.hbm [resolvable:$true] %s22
      %s24 = sshll.u32 [#allocation2], 4
      %s25 = int_to_ptr.vmem [resolvable:$true] %s24
      %30 = dma.hbm_to_vmem [thread:$0]  %s23, 1024, %s25, [#allocation3], 64, 64, 4
    $region17: #{tpu_custom_call.1} parent=1 // pred_fallthru
      _
    // Predicated region
    $region18: #{tpu_custom_call.1} parent=1 // pred_check
      _
    $region19: #{tpu_custom_call.1} parent=1 // pred_check_branch
      %32 = sbr.rel (0) target = $region21
    $region20: #{tpu_custom_call.1} parent=1 // pred_region
      _
    $region21: #{tpu_custom_call.1} parent=1 // pred_fallthru
      _
    // Predicated region
    $region22: #{tpu_custom_call.1} parent=1 // pred_check
      _
    $region23: #{tpu_custom_call.1} parent=1 // pred_check_branch
      %34 = sbr.rel (0) target = $region25
    $region24: #{tpu_custom_call.1} parent=1 // pred_region
      %36 = dma.done [#allocation3], 1024
    $region25: #{tpu_custom_call.1} parent=1 // pred_fallthru
      _
    %v38 = vld [vmem:[%s0] sm:$0xff]
    %v39 = vld [vmem:[%s0 + $0x8] sm:$0xff]
    %v40 = vld [vmem:[%s0 + $0x10] sm:$0xff]
    %v41 = vld [vmem:[%s0 + $0x18] sm:$0xff]
    %v42 = vpack.c.bf16 %v39, %v38
    %v43 = vpack.c.bf16 %v41, %v40
    %v44 = vld [vmem:[%s1] sm:$0xf]
    %v45 = vld [vmem:[%s2] sm:$0x1]
    %v47 = vperm.slane %v45, 0
    %vm49 = vcmask 64512
    %v51 = vsel %vm49, %v42, 0
    %v54 = vsel %vm49, %v43, 0
    %vm56 = vcmask 1043456
    %v58 = vsel %vm56, %v44, 0
    %60 = vmatpush.bf16.msra.mxu0 0
    %61 = vmatpush.bf16.msra.mxu0 0
    %62 = vmatpush.bf16.msra.mxu0 0
    %63 = vmatpush.bf16.msra.mxu0 0
    %64 = vmatpush.bf16.msra.mxu0 0
    %65 = vmatpush.bf16.msra.mxu0 0
    %66 = vmatpush.bf16.msra.mxu0 0
    %67 = vmatpush.bf16.msra.mxu0 %v58
    %68 = vmatmul.bf16.gmra.mxu0 %v51
    %v69 = vpop.f32.mrf.mxu0
    %v70 = vadd.f32 %v47, %v69
    %v71 = vpop.f32.mrf.mxu0
    %v72 = vadd.f32 %v47, %v71
    %73 = vmatmul.bf16.gmra.mxu0 %v54
    %v74 = vpop.f32.mrf.mxu0
    %v75 = vadd.f32 %v47, %v74
    %v76 = vpop.f32.mrf.mxu0
    %v77 = vadd.f32 %v47, %v76
    %78 = vdwg.mxu0
    %v79 = vtanh.pop %v70
    %v80 = vtanh.pop %v72
    %v81 = vtanh.pop %v75
    %v82 = vtanh.pop %v77
    %v83 = vpack.c.bf16 %v80, %v79
    %v84 = vpack.c.bf16 %v82, %v81
    %v85 = vld [vmem:[#allocation2] sm:$0xf]
    %v86 = vld [vmem:[#allocation2 + $0x4] sm:$0xf]
    %v87 = vld [vmem:[#allocation2 + $0x8] sm:$0xf]
    %v88 = vld [vmem:[#allocation2 + $0xc] sm:$0xf]
    %v89 = vld [vmem:[#allocation2 + $0x10] sm:$0xf]
    %v90 = vld [vmem:[#allocation2 + $0x14] sm:$0xf]
    %v91 = vld [vmem:[#allocation2 + $0x18] sm:$0xf]
    %v92 = vld [vmem:[#allocation2 + $0x1c] sm:$0xf]
    %v93 = vld [vmem:[#allocation2 + $0x20] sm:$0xf]
    %v94 = vld [vmem:[#allocation2 + $0x24] sm:$0xf]
    %v95 = vld [vmem:[#allocation2 + $0x28] sm:$0xf]
    %v96 = vld [vmem:[#allocation2 + $0x2c] sm:$0xf]
    %v97 = vld [vmem:[#allocation2 + $0x30] sm:$0xf]
    %v98 = vld [vmem:[#allocation2 + $0x34] sm:$0xf]
    %v99 = vld [vmem:[#allocation2 + $0x38] sm:$0xf]
    %v100 = vld [vmem:[#allocation2 + $0x3c] sm:$0xf]
    %v101 = vld [vmem:[%s4] sm:$0x1]
    %v103 = vperm.slane %v101, 0
    %v121 = vunpack.c.l.b16 %v85
    %v122 = vunpack.c.l.b16 %v86
    %v123 = vunpack.c.l.b16 %v87
    %v124 = vunpack.c.l.b16 %v88
    %v125 = vunpack.c.l.b16 %v89
    %v126 = vunpack.c.l.b16 %v90
    %v127 = vunpack.c.l.b16 %v91
    %v128 = vunpack.c.l.b16 %v92
    %v129 = vunpack.c.l.b16 %v93
    %v130 = vunpack.c.l.b16 %v94
    %v131 = vunpack.c.l.b16 %v95
    %v132 = vunpack.c.l.b16 %v96
    %v133 = vunpack.c.l.b16 %v97
    %v134 = vunpack.c.l.b16 %v98
    %v135 = vunpack.c.l.b16 %v99
    %v136 = vunpack.c.l.b16 %v100
    %v137 = vpack.c.b16 %v122, %v121
    %v138 = vpack.c.b16 %v124, %v123
    %v139 = vpack.c.b16 %v126, %v125
    %v140 = vpack.c.b16 %v128, %v127
    %v141 = vpack.c.b16 %v130, %v129
    %v142 = vpack.c.b16 %v132, %v131
    %v143 = vpack.c.b16 %v134, %v133
    %v144 = vpack.c.b16 %v136, %v135
    %153 = vmatpush.bf16.msra.mxu0 %v144
    %154 = vmatpush.bf16.msra.mxu0 %v143
    %155 = vmatpush.bf16.msra.mxu0 %v142
    %156 = vmatpush.bf16.msra.mxu0 %v141
    %157 = vmatpush.bf16.msra.mxu0 %v140
    %158 = vmatpush.bf16.msra.mxu0 %v139
    %159 = vmatpush.bf16.msra.mxu0 %v138
    %160 = vmatpush.bf16.msra.mxu0 %v137
    %161 = vmatmul.bf16.gmra.mxu0 %v83
    %v162 = vpop.f32.mrf.mxu0
    %v163 = vadd.f32 %v103, %v162
    %v164 = vpop.f32.mrf.mxu0
    %v165 = vadd.f32 %v103, %v164
    %166 = vmatmul.bf16.gmra.mxu0 %v84
    %v167 = vpop.f32.mrf.mxu0
    %v168 = vadd.f32 %v103, %v167
    %v169 = vpop.f32.mrf.mxu0
    %v170 = vadd.f32 %v103, %v169
    %171 = vdwg.mxu0
    %172 = vst [vmem:[#allocation5] sm:$0xff] %v163
    %173 = vst [vmem:[#allocation5 + $0x8] sm:$0xff] %v165
    %174 = vst [vmem:[#allocation5 + $0x10] sm:$0xff] %v168
    %175 = vst [vmem:[#allocation5 + $0x18] sm:$0xff] %v170
    // Predicated region
    $region26: #{tpu_custom_call.1} parent=1 // pred_check
      _
    $region27: #{tpu_custom_call.1} parent=1 // pred_check_branch
      %177 = sbr.rel (0) target = $region29
    $region28: #{tpu_custom_call.1} parent=1 // pred_region
      %179 = vsyncadd [#allocation4], 0
      %s180 = sshll.u32 [#allocation5], 4
      %s181 = int_to_ptr.vmem [resolvable:$true] %s180
      %s182 = sshll.u32 %s5, 4
      %s183 = int_to_ptr.hbm [resolvable:$true] %s182
      %188 = dma.vmem_to_hbm [thread:$0]  %s181, 512, %s183, [#allocation4], 128, 128, 8
    $region29: #{tpu_custom_call.1} parent=1 // pred_fallthru
      _
    // Predicated region
    $region30: #{tpu_custom_call.1} parent=1 // pred_check
      _
    $region31: #{tpu_custom_call.1} parent=1 // pred_check_branch
      %190 = sbr.rel (0) target = $region33
    $region32: #{tpu_custom_call.1} parent=1 // pred_region
      %192 = dma.done [#allocation4], 512
    $region33: #{tpu_custom_call.1} parent=1 // pred_fallthru
      _
    %193 = vsyncpa [#allocation3], 1
    %194 = vsyncpa [#allocation4], 1

</llo_original>
